<compile_context>
chip_gen: v7x
topology: tpu7x:2x2x1
jax: 0.10.0
libtpu: 0.0.40
codegen_flags: <defaults>
</compile_context>

<pallas_src>
import functools

import jax
import jax.numpy as jnp
from jax.experimental import pallas as pl
from jax.experimental.pallas import tpu as pltpu


def _round_up(n, m):
    return ((n + m - 1) // m) * m


# ----------------------------- kernels --------------------------------------


def _linear_kernel_k1(x_ref, wt_ref, b_ref, o_ref):
    # Whole contraction in a single K tile: no accumulator RMW, no pl.when.
    # x_ref: (tm, INp) bf16, wt_ref: (INp, tn) bf16, b_ref: (1, tn) f32.
    o_ref[...] = (
        jnp.dot(x_ref[...], wt_ref[...], preferred_element_type=jnp.float32)
        + b_ref[...]
    ).astype(o_ref.dtype)


def _linear_kernel_acc(x_ref, wt_ref, b_ref, o_ref, acc_ref):
    # General (M, N, K) tiled matmul with an f32 VMEM accumulator resident
    # across the K axis (last grid axis, "arbitrary").
    @pl.when(pl.program_id(2) == 0)
    def _():
        acc_ref[...] = jnp.zeros_like(acc_ref)

    acc_ref[...] += jnp.dot(x_ref[...], wt_ref[...],
                            preferred_element_type=jnp.float32)

    @pl.when(pl.program_id(2) == pl.num_programs(2) - 1)
    def _():
        # f32 epilogue: bias add + single cast at the final lane-dense store.
        o_ref[...] = (acc_ref[...] + b_ref[...]).astype(o_ref.dtype)


# --------------------------- pallas_call wrapper -----------------------------


def _linear_padded(x_pad, wt_pad, bias_pad, tm, tn, tk):
    """Tiled linear on already padded operands (shapes are tile multiples)."""
    Bp, INp = x_pad.shape
    INw, OUTp = wt_pad.shape
    assert INp == INw and Bp % tm == 0 and OUTp % tn == 0 and INp % tk == 0

    m_blocks, n_blocks, k_blocks = Bp // tm, OUTp // tn, INp // tk
    isz = x_pad.dtype.itemsize  # 2 for bf16

    # Real HBM traffic under this grid order: x re-read per N block, W re-read
    # per M block, output written once, bias negligible.
    cost = pl.CostEstimate(
        flops=2 * Bp * INp * OUTp,
        transcendentals=0,
        bytes_accessed=(isz * Bp * INp * n_blocks
                        + isz * INp * OUTp * m_blocks
                        + 4 * Bp * OUTp
                        + 4 * OUTp),
    )
    out_shape = jax.ShapeDtypeStruct((Bp, OUTp), jnp.float32)

    if k_blocks == 1:
        # Single-K streaming kernel: 2-D parallel grid, no scratch.
        return pl.pallas_call(
            _linear_kernel_k1,
            out_shape=out_shape,
            grid_spec=pltpu.PrefetchScalarGridSpec(
                num_scalar_prefetch=0,
                grid=(m_blocks, n_blocks),
                in_specs=[
                    pl.BlockSpec((tm, tk), lambda i, j: (i, 0)),
                    pl.BlockSpec((tk, tn), lambda i, j: (0, j)),
                    pl.BlockSpec((1, tn), lambda i, j: (0, j)),
                ],
                out_specs=pl.BlockSpec((tm, tn), lambda i, j: (i, j)),
            ),
            compiler_params=pltpu.CompilerParams(
                dimension_semantics=("parallel", "parallel"),
            ),
            cost_estimate=cost,
        )(x_pad, wt_pad, bias_pad)

    # General K-tiled path with f32 accumulator scratch.
    return pl.pallas_call(
        _linear_kernel_acc,
        out_shape=out_shape,
        grid_spec=pltpu.PrefetchScalarGridSpec(
            num_scalar_prefetch=0,
            grid=(m_blocks, n_blocks, k_blocks),
            in_specs=[
                pl.BlockSpec((tm, tk), lambda i, j, k: (i, k)),
                pl.BlockSpec((tk, tn), lambda i, j, k: (k, j)),
                pl.BlockSpec((1, tn), lambda i, j, k: (0, j)),
            ],
            out_specs=pl.BlockSpec((tm, tn), lambda i, j, k: (i, j)),
            scratch_shapes=[pltpu.VMEM((tm, tn), jnp.float32)],
        ),
        compiler_params=pltpu.CompilerParams(
            dimension_semantics=("parallel", "parallel", "arbitrary"),
        ),
        cost_estimate=cost,
    )(x_pad, wt_pad, bias_pad)


# Whole forward (bf16 cast + pad -> pallas_call -> slice) under one jit, so
# the pad fuses with the cast and per-call Python dispatch is removed.
@functools.partial(
    jax.jit, static_argnames=("bp", "tm", "tn", "tk", "out_features"))
def _forward_impl(x, wt_pad, bias_pad, *, bp, tm, tn, tk, out_features):
    B, IN = x.shape
    in_pad = wt_pad.shape[0]
    x_bf = x.astype(jnp.bfloat16)
    if (bp, in_pad) != (B, IN):
        x_bf = jnp.pad(x_bf, ((0, bp - B), (0, in_pad - IN)))
    out = _linear_padded(x_bf, wt_pad, bias_pad, tm, tn, tk)
    return out[:B, :out_features]


# ------------------------------- module --------------------------------------


class LinearRegressionPallas:
    """JAX/Pallas mirror of the PyTorch LinearRegression module's forward."""

    def __init__(self, input_dim, output_dim, key, *, tm=512, tn=512, tk=1024):
        self.in_features = int(input_dim)
        self.out_features = int(output_dim)

        # Tile sizes. bf16 inputs + f32 output/acc, double buffered:
        #   2*(tm*tk + tk*tn)*2 + 2*tm*tn*4 + tm*tn*4 ~ 7 MiB at 512/512/1024,
        # well inside the 32 MiB default scoped VMEM on v5e/v6e/v7x.
        self.tm_pref = tm
        self.tn = _round_up(self.out_features, 128) if self.out_features <= tn else tn
        # If the whole contraction fits one tile (the usual case), collapse K.
        self.tk = _round_up(self.in_features, 128) if self.in_features <= tk else tk
        in_pad = _round_up(self.in_features, self.tk)
        out_pad = _round_up(self.out_features, self.tn)

        # Deterministic init matching nn.Linear's default:
        # U(-1/sqrt(in), 1/sqrt(in)) for both weight and bias (kept in f32).
        kw, kb = jax.random.split(key)
        bound = 1.0 / (self.in_features ** 0.5)
        self.weight = jax.random.uniform(
            kw, (self.out_features, self.in_features), jnp.float32, -bound, bound)
        self.bias = jax.random.uniform(
            kb, (self.out_features,), jnp.float32, -bound, bound)

        # Pre-transpose + zero-pad + cast to bf16 ONCE at init (native MXU
        # input dtype; no per-forward weight.T / pad copies in HBM). Zero
        # rows/cols contribute 0 to the contraction, so the math is unchanged.
        self.weight_t_pad = (
            jnp.zeros((in_pad, out_pad), jnp.bfloat16)
            .at[: self.in_features, : self.out_features]
            .set(self.weight.T.astype(jnp.bfloat16))
        )
        # Bias stays f32 and is added in the f32 epilogue.
        self.bias_pad = (
            jnp.zeros((1, out_pad), jnp.float32)
            .at[0, : self.out_features]
            .set(self.bias)
        )

    def _pick_tm(self, batch, n_blocks):
        if batch > self.tm_pref:
            return self.tm_pref                 # many M blocks, 256-aligned rows
        if n_blocks >= 2 or batch <= 16:
            return _round_up(batch, 16)         # single full block is fine
        # Only one N block and B fits one tile: split M into 2 blocks so both
        # v7x TensorCores get work on the "parallel" axes.
        return _round_up((batch + 1) // 2, 16)

    def forward(self, x):
        B, IN = x.shape
        assert IN == self.in_features
        in_pad, out_pad = self.weight_t_pad.shape

        tm = self._pick_tm(B, out_pad // self.tn)
        bp = _round_up(B, tm)

        return _forward_impl(
            x, self.weight_t_pad, self.bias_pad,
            bp=bp, tm=tm, tn=self.tn, tk=self.tk,
            out_features=self.out_features)


if __name__ == "__main__":
    key = jax.random.PRNGKey(0)
    k_param, k_x = jax.random.split(key)

    # Small shapes consistent with the module (at this size the kernel is pure
    # per-step overhead; the tiling/padding machinery is what lets the same
    # code scale to real batch / feature sizes).
    batch, in_features, out_features = 8, 32, 16
    model = LinearRegressionPallas(in_features, out_features, k_param)

    x = jax.random.normal(k_x, (batch, in_features), jnp.float32)

    pred = jax.block_until_ready(model.forward(x))
    assert pred.shape == (batch, out_features)

    # Tight check against a reference that uses the same bf16-rounded inputs
    # with f32 accumulation (what the MXU computes).
    xb = x.astype(jnp.bfloat16).astype(jnp.float32)
    wb = model.weight.astype(jnp.bfloat16).astype(jnp.float32)
    ref_bf16 = xb @ wb.T + model.bias
    assert jnp.allclose(pred, ref_bf16, atol=1e-3, rtol=1e-3)

    # Loose sanity check against the exact f32 nn.Linear forward.
    ref_f32 = x @ model.weight.T + model.bias
    assert jnp.allclose(pred, ref_f32, atol=5e-2, rtol=5e-2)

    print("KERNEL_OK")
</pallas_src>

<mosaic_0001>
module attributes {stable_mosaic.version = 11 : i64} {
  func.func @_linear_kernel_k1(%arg0: i32, %arg1: i32, %arg2: memref<16x128xbf16, #tpu.memory_space<vmem>>, %arg3: memref<128x128xbf16, #tpu.memory_space<vmem>>, %arg4: memref<1x128xf32, #tpu.memory_space<vmem>>, %arg5: memref<16x128xf32, #tpu.memory_space<vmem>>) attributes {dimension_semantics = [#tpu.dimension_semantics<parallel>, #tpu.dimension_semantics<parallel>], iteration_bounds = array<i64: 1, 1>, scalar_prefetch = 0 : i64, scratch_operands = 0 : i64, tpu.core_type = #tpu.core_type<tc>, window_params = [{transform_indices = @transform_0, window_bounds = array<i64: 16, 128>}, {transform_indices = @transform_1, window_bounds = array<i64: 128, 128>}, {transform_indices = @transform_2, window_bounds = array<i64: 1, 128>}, {transform_indices = @transform_3, window_bounds = array<i64: 16, 128>}]} {
    %c0 = arith.constant 0 : index
    %c0_0 = arith.constant 0 : index
    %0 = vector.load %arg2[%c0, %c0_0] : memref<16x128xbf16, #tpu.memory_space<vmem>>, vector<16x128xbf16>
    %c0_1 = arith.constant 0 : index
    %c0_2 = arith.constant 0 : index
    %1 = vector.load %arg3[%c0_1, %c0_2] : memref<128x128xbf16, #tpu.memory_space<vmem>>, vector<128x128xbf16>
    %cst = arith.constant dense<0.000000e+00> : vector<16x128xf32>
    %2 = tpu.matmul %0, %1, %cst {dimension_numbers = #tpu.dot_dimension_numbers<[1], [0], [0], [1], [0, 0, 1, 1], [], []>} : vector<16x128xbf16>, vector<128x128xbf16>, vector<16x128xf32> -> vector<16x128xf32>
    %c0_3 = arith.constant 0 : index
    %c0_4 = arith.constant 0 : index
    %3 = vector.load %arg4[%c0_3, %c0_4] : memref<1x128xf32, #tpu.memory_space<vmem>>, vector<1x128xf32>
    %4 = vector.broadcast %3 : vector<1x128xf32> to vector<16x128xf32>
    %5 = arith.addf %2, %4 : vector<16x128xf32>
    %c0_5 = arith.constant 0 : index
    %c0_6 = arith.constant 0 : index
    %6 = vector.load %arg5[%c0_5, %c0_6] : memref<16x128xf32, #tpu.memory_space<vmem>>, vector<16x128xf32>
    tpu.vector_store %arg5[%c0_5, %c0_6], %5 {strides = array<i32>} : memref<16x128xf32, #tpu.memory_space<vmem>>, vector<16x128xf32>,
    return
  }
  func.func @transform_0(%arg0: i32, %arg1: i32) -> (i32, i32) {
    %c0_i32 = arith.constant 0 : i32
    %c0_i32_0 = arith.constant 0 : i32
    return %arg0, %c0_i32 : i32, i32
  }
  func.func @transform_1(%arg0: i32, %arg1: i32) -> (i32, i32) {
    %c0_i32 = arith.constant 0 : i32
    %c0_i32_0 = arith.constant 0 : i32
    return %c0_i32, %arg1 : i32, i32
  }
  func.func @transform_2(%arg0: i32, %arg1: i32) -> (i32, i32) {
    %c0_i32 = arith.constant 0 : i32
    %c0_i32_0 = arith.constant 0 : i32
    return %c0_i32, %arg1 : i32, i32
  }
  func.func @transform_3(%arg0: i32, %arg1: i32) -> (i32, i32) {
    %c0_i32 = arith.constant 0 : i32
    return %arg0, %arg1 : i32, i32
  }
}

</mosaic_0001>

<llo_original>
// kernel: _forward_impl.1
$region0: #{_forward_impl.1}
  #allocation0 [shape = 'u32[]', space=smem, size = 0x4, offset = 0x4, fixed_abs, tag = 'smem constant byte address 0x4 - core index']
  #allocation1 [shape = 'u32[144,128]{1,0:T(1,128)}', space=vmem, size = 0x12000, scoped, tag = 'internal scratch']
  %s0 = inlined_call_operand.vmem [shape: bf16[16,128], index: 0, kind: input, shape index: {}]
  %s1 = inlined_call_operand.hbm [shape: bf16[128,128], index: 1, kind: input, shape index: {}]
  %s2 = inlined_call_operand.vmem [shape: f32[1,128], index: 2, kind: input, shape index: {}]
  %s3 = inlined_call_operand.vmem [shape: f32[16,128], index: 3, kind: output, shape index: {}]
  %s4 = sld [smem:[#allocation0]]
  $region26: #{_forward_impl.1} parent=0
    _
  %s6 = ssub.s32 1, %s4
  %s7 = scalar_select 0, %s6, %s4
  $region1: #{_forward_impl.1} parent=0
    #allocation2 [shape = 'u8[32768]{0}', space=vmem, size = 0x8000, scoped, tag = 'input window, operand 1, single buffered']
    #allocation3 [shape = 's32[1]{0}', space=sflag, size = 0x4, scoped, tag = 'scoped memory for _forward_impl.1']
    %8 = vsyncpa [#allocation3], 0
    // Predicated region
    $region2: #{_forward_impl.1} parent=1 // pred_check
      _
    $region3: #{_forward_impl.1} parent=1 // pred_check_branch
      %10 = sbr.rel (0) target = $region5
    $region4: #{_forward_impl.1} parent=1 // pred_region
      _
    $region5: #{_forward_impl.1} parent=1 // pred_fallthru
      _
    // Predicated region
    $region6: #{_forward_impl.1} parent=1 // pred_check
      _
    $region7: #{_forward_impl.1} parent=1 // pred_check_branch
      %12 = sbr.rel (0) target = $region9
    $region8: #{_forward_impl.1} parent=1 // pred_region
      %s14 = ssub.s32 1024, 1024
      %15 = vsyncadd [#allocation3], %s14
      %s16 = sshll.u32 [#allocation2], 4
      %s17 = int_to_ptr.vmem [resolvable:$true] %s16
      %22 = dma.hbm_to_vmem [thread:$0]  %s1, 1024, %s17, [#allocation3], 64, 64, 4
    $region9: #{_forward_impl.1} parent=1 // pred_fallthru
      _
    // Predicated region
    $region10: #{_forward_impl.1} parent=1 // pred_check
      _
    $region11: #{_forward_impl.1} parent=1 // pred_check_branch
      %24 = sbr.rel (0) target = $region13
    $region12: #{_forward_impl.1} parent=1 // pred_region
      _
    $region13: #{_forward_impl.1} parent=1 // pred_fallthru
      _
    // Predicated region
    $region14: #{_forward_impl.1} parent=1 // pred_check
      _
    $region15: #{_forward_impl.1} parent=1 // pred_check_branch
      %26 = sbr.rel (0) target = $region17
    $region16: #{_forward_impl.1} parent=1 // pred_region
      %27 = dma.done [#allocation3], 1024
    $region17: #{_forward_impl.1} parent=1 // pred_fallthru
      _
    %v29 = vld [vmem:[%s0] sm:$0xf]
    %v30 = vld [vmem:[%s0 + $0x4] sm:$0xf]
    %v31 = vld [vmem:[#allocation2] sm:$0xf]
    %v32 = vld [vmem:[#allocation2 + $0x4] sm:$0xf]
    %v33 = vld [vmem:[#allocation2 + $0x8] sm:$0xf]
    %v34 = vld [vmem:[#allocation2 + $0xc] sm:$0xf]
    %v35 = vld [vmem:[#allocation2 + $0x10] sm:$0xf]
    %v36 = vld [vmem:[#allocation2 + $0x14] sm:$0xf]
    %v37 = vld [vmem:[#allocation2 + $0x18] sm:$0xf]
    %v38 = vld [vmem:[#allocation2 + $0x1c] sm:$0xf]
    %v39 = vld [vmem:[#allocation2 + $0x20] sm:$0xf]
    %v40 = vld [vmem:[#allocation2 + $0x24] sm:$0xf]
    %v41 = vld [vmem:[#allocation2 + $0x28] sm:$0xf]
    %v42 = vld [vmem:[#allocation2 + $0x2c] sm:$0xf]
    %v43 = vld [vmem:[#allocation2 + $0x30] sm:$0xf]
    %v44 = vld [vmem:[#allocation2 + $0x34] sm:$0xf]
    %v45 = vld [vmem:[#allocation2 + $0x38] sm:$0xf]
    %v46 = vld [vmem:[#allocation2 + $0x3c] sm:$0xf]
    %v47 = vld [vmem:[%s2] sm:$0x1]
    %v49 = vlaneseq
    %v50 = vshrl.u32 %v49, 7
    %v51 = vsub.s32 0, %v50
    %v52 = vrot.slane %v47, %v51
    %v56 = vunpack.c.l.b16 %v29
    %v57 = vunpack.c.l.b16 %v30
    %v58 = vpack.c.b16 %v57, %v56
    %v76 = vunpack.c.l.b16 %v31
    %v77 = vunpack.c.l.b16 %v32
    %v78 = vunpack.c.l.b16 %v33
    %v79 = vunpack.c.l.b16 %v34
    %v80 = vunpack.c.l.b16 %v35
    %v81 = vunpack.c.l.b16 %v36
    %v82 = vunpack.c.l.b16 %v37
    %v83 = vunpack.c.l.b16 %v38
    %v84 = vunpack.c.l.b16 %v39
    %v85 = vunpack.c.l.b16 %v40
    %v86 = vunpack.c.l.b16 %v41
    %v87 = vunpack.c.l.b16 %v42
    %v88 = vunpack.c.l.b16 %v43
    %v89 = vunpack.c.l.b16 %v44
    %v90 = vunpack.c.l.b16 %v45
    %v91 = vunpack.c.l.b16 %v46
    %v92 = vpack.c.b16 %v77, %v76
    %v93 = vpack.c.b16 %v79, %v78
    %v94 = vpack.c.b16 %v81, %v80
    %v95 = vpack.c.b16 %v83, %v82
    %v96 = vpack.c.b16 %v85, %v84
    %v97 = vpack.c.b16 %v87, %v86
    %v98 = vpack.c.b16 %v89, %v88
    %v99 = vpack.c.b16 %v91, %v90
    %108 = vmatprep.subr.bf16.mxu0 0
    %109 = vmatpush1.bf16.msra.mxu0 %v92
    %110 = vmatprep.subr.bf16.mxu0 0
    %111 = vmatpush1.bf16.msra.mxu0 %v93
    %112 = vmatprep.subr.bf16.mxu0 0
    %113 = vmatpush1.bf16.msra.mxu0 %v94
    %114 = vmatprep.subr.bf16.mxu0 0
    %115 = vmatpush1.bf16.msra.mxu0 %v95
    %116 = vmatprep.subr.bf16.mxu0 0
    %117 = vmatpush1.bf16.msra.mxu0 %v96
    %118 = vmatprep.subr.bf16.mxu0 0
    %119 = vmatpush1.bf16.msra.mxu0 %v97
    %120 = vmatprep.subr.bf16.mxu0 0
    %121 = vmatpush1.bf16.msra.mxu0 %v98
    %122 = vmatprep.subr.bf16.mxu0 0
    %123 = vmatpush1.bf16.msra.mxu0 %v99
    %124 = vmatprep.subr.bf16.mxu0 0
    %125 = vmatpush1.bf16.msra.mxu0 0
    %126 = vmatprep.subr.bf16.mxu0 0
    %127 = vmatpush1.bf16.msra.mxu0 0
    %128 = vmatprep.subr.bf16.mxu0 0
    %129 = vmatpush1.bf16.msra.mxu0 0
    %130 = vmatprep.subr.bf16.mxu0 0
    %131 = vmatpush1.bf16.msra.mxu0 0
    %132 = vmatprep.subr.bf16.mxu0 0
    %133 = vmatpush1.bf16.msra.mxu0 0
    %134 = vmatprep.subr.bf16.mxu0 0
    %135 = vmatpush1.bf16.msra.mxu0 0
    %136 = vmatprep.subr.bf16.mxu0 0
    %137 = vmatpush1.bf16.msra.mxu0 0
    %138 = vmatprep.subr.bf16.mxu0 0
    %139 = vmatpush1.bf16.msra.mxu0 0
    %140 = vmatprep.mubr.bf16.mxu0 0
    %141 = vmatmul.mubr.bf16.gmra.mrb[0].mxu0 %v58
    %v142 = vpop.f32.mrb[0].mxu0
    %v143 = vadd.f32 %v52, %v142
    %v144 = vpop.f32.mrb[0].mxu0
    %v145 = vpop.f32.mrb[0].mxu0
    %v146 = vadd.f32 %v52, %v145
    %v147 = vpop.f32.mrb[0].mxu0
    %148 = vdwg.mxu0
    %149 = vst [vmem:[%s3] sm:$0xff] %v143
    %150 = vst [vmem:[%s3 + $0x8] sm:$0xff] %v146
    // Predicated region
    $region18: #{_forward_impl.1} parent=1 // pred_check
      _
    $region19: #{_forward_impl.1} parent=1 // pred_check_branch
      %152 = sbr.rel (0) target = $region21
    $region20: #{_forward_impl.1} parent=1 // pred_region
      _
    $region21: #{_forward_impl.1} parent=1 // pred_fallthru
      _
    // Predicated region
    $region22: #{_forward_impl.1} parent=1 // pred_check
      _
    $region23: #{_forward_impl.1} parent=1 // pred_check_branch
      %154 = sbr.rel (0) target = $region25
    $region24: #{_forward_impl.1} parent=1 // pred_region
      _
    $region25: #{_forward_impl.1} parent=1 // pred_fallthru
      _
    %155 = vsyncpa [#allocation3], 1

</llo_original>
